<compile_context>
chip_gen: v6e
topology: v6e:2x2x1
jax: 0.10.0
libtpu: 0.0.40
codegen_flags: <defaults>
</compile_context>

<pallas_src>
import functools

import jax
import jax.numpy as jnp
from jax import lax
from jax.experimental import pallas as pl
from jax.experimental.pallas import tpu as pltpu


def _project_titles_kernel(t_ref, w_ref, b_ref, tn_t_ref, tn_ref):
    """Project + L2-normalize one [tile_t, H] slab of titles.

    t_ref    : [tile_t, H] title 'cls' embeddings (pipelined)
    w_ref    : [H, E]      projection weight (resident)
    b_ref    : [1, E]      projection bias, f32 (resident)
    tn_t_ref : [E, tile_t] output: normalized titles, transposed (matmul dtype)
    tn_ref   : [tile_t, E] output: normalized titles, row-major (matmul dtype)
    """
    y = jnp.dot(t_ref[...], w_ref[...], preferred_element_type=jnp.float32)
    y = y + b_ref[...]
    # F.normalize(p=2, dim=-1, eps=1e-12): x / max(||x||, eps), via rsqrt (EUP).
    ssq = jnp.sum(y * y, axis=-1, keepdims=True)
    yn = (y * lax.rsqrt(jnp.maximum(ssq, 1e-24))).astype(tn_ref.dtype)
    tn_ref[...] = yn
    tn_t_ref[...] = yn.T        # one XLU transpose per title tile (once, total)


def _batchneg_loss_kernel(q_ref, tnt_ref, tmatch_ref, w_ref, b_ref, part_ref, *,
                          margin_x_scale, scale, sim_dtype):
    """One grid step: [tile_b, H] queries vs all B titles (already projected).

    q_ref     : [tile_b, H] query 'cls' embeddings               (pipelined)
    tnt_ref   : [E, B]      normalized titles, transposed         (resident, matmul dtype)
    tmatch_ref: [tile_b, E] matching (positive-pair) title rows   (pipelined, matmul dtype)
    w_ref     : [H, E]      projection weight                     (resident)
    b_ref     : [1, E]      projection bias, f32                  (resident)
    part_ref  : [8, 128]    per-tile partial loss sum (scalar broadcast)
    """
    # Project + L2-normalize the query tile; fold `scale` into the rows so the
    # [tile_b, B] logits never need a separate scale multiply.
    y = jnp.dot(q_ref[...], w_ref[...], preferred_element_type=jnp.float32)
    y = y + b_ref[...]
    ssq = jnp.sum(y * y, axis=-1, keepdims=True)
    qn_s = y * (lax.rsqrt(jnp.maximum(ssq, 1e-24)) * scale)    # [tile_b, E] f32, pre-scaled
    qn_mm = qn_s.astype(sim_dtype)

    # Scaled similarities vs all titles: plain [tile_b,E] x [E,B] MXU matmul,
    # lane dim = B (lane-dense), no per-step transpose / cast of the titles.
    sim = jnp.dot(qn_mm, tnt_ref[...], preferred_element_type=jnp.float32)   # [tile_b, B]

    # Scaled positive-pair logit from the matching title block (no [tile_b,B] mask).
    d = jnp.sum(qn_mm.astype(jnp.float32) * tmatch_ref[...].astype(jnp.float32),
                axis=-1, keepdims=True)                                       # [tile_b, 1]

    # cross_entropy(logits, labels=row) where logits = sim with the diagonal
    # lowered by margin*scale.  Apply the margin as an O(tile_b) correction of
    # the exp-sum; the unadjusted row max is still a valid (safe) shift.
    m = jnp.max(sim, axis=-1, keepdims=True)
    e_sum = jnp.sum(jnp.exp(sim - m), axis=-1, keepdims=True)
    e_sum = e_sum + jnp.exp(d - margin_x_scale - m) - jnp.exp(d - m)
    lse = jnp.log(e_sum) + m
    target = d - margin_x_scale
    part_ref[...] = jnp.broadcast_to(jnp.sum(lse - target),
                                     part_ref.shape).astype(jnp.float32)


def semantic_index_batchneg_loss(q_cls, t_cls, w, b, *, margin=0.3, scale=30.0,
                                 tile_b=None, tile_t=None, matmul_dtype=None):
    """q_cls, t_cls: [B, H]; w: [H, E]; b: [E] or [1, E] -> scalar f32 loss.

    matmul_dtype=jnp.bfloat16 routes the MXU matmuls through bf16 (f32
    accumulate), stores the normalized titles in bf16 (half the resident
    VMEM, no per-step casts) and halves the q/t/w DMA bytes; the
    normalization / exp / LSE stay in f32 on all chips.
    """
    B, H = q_cls.shape
    E = w.shape[1]
    out_dtype = jnp.float32 if matmul_dtype is None else matmul_dtype
    sim_dtype = jnp.float32 if matmul_dtype is None else matmul_dtype
    min_tile = 8 if matmul_dtype is None else 16     # f32 / bf16 sublane minimums

    # tile defaults: 256 fills the v6e/v7x 256x256 MXU; pass tile_b=128 on v5e.
    if tile_b is None:
        tile_b = min(B, 256)
    if tile_t is None:
        tile_t = min(B, 256)
    assert tile_b >= min_tile and tile_t >= min_tile, (tile_b, tile_t, min_tile)
    # TODO(synk): ragged batches need padding/masking; only even splits supported.
    assert B % tile_b == 0 and B % tile_t == 0, (B, tile_b, tile_t)
    # Transposed-title output blocks are [E, tile_t]; keep the lane dim legal.
    assert tile_t % 128 == 0 or tile_t == B, tile_t

    if matmul_dtype is not None:
        q_cls = q_cls.astype(matmul_dtype)
        t_cls = t_cls.astype(matmul_dtype)
        w = w.astype(matmul_dtype)
    b = b.astype(jnp.float32).reshape(1, E)

    cparams = pltpu.CompilerParams(
        dimension_semantics=("parallel",),        # no carried state -> megacore-friendly
        vmem_limit_bytes=48 * 1024 * 1024,        # headroom under v7x's 64 MiB VMEM
    )

    # Stage 1: project + L2-normalize all titles once, pipelined over tiles.
    tn_t, tn = pl.pallas_call(
        _project_titles_kernel,
        out_shape=(jax.ShapeDtypeStruct((E, B), out_dtype),
                   jax.ShapeDtypeStruct((B, E), out_dtype)),
        grid=(B // tile_t,),
        in_specs=[
            pl.BlockSpec((tile_t, H), lambda i: (i, 0)),   # title tile (pipelined)
            pl.BlockSpec((H, E), lambda i: (0, 0)),        # weight (resident)
            pl.BlockSpec((1, E), lambda i: (0, 0)),        # bias (resident)
        ],
        out_specs=[
            pl.BlockSpec((E, tile_t), lambda i: (0, i)),   # transposed copy
            pl.BlockSpec((tile_t, E), lambda i: (i, 0)),   # row-major copy
        ],
        compiler_params=cparams,
    )(t_cls, w, b)

    # Stage 2: per-query-tile partial loss sums; final mean in plain JAX so the
    # query axis stays "parallel" (v7x megacore) with no carried accumulator.
    num_tiles = B // tile_b
    kernel = functools.partial(
        _batchneg_loss_kernel,
        margin_x_scale=float(margin) * float(scale),
        scale=float(scale),
        sim_dtype=sim_dtype)
    partials = pl.pallas_call(
        kernel,
        out_shape=jax.ShapeDtypeStruct((num_tiles * 8, 128), jnp.float32),
        grid=(num_tiles,),
        in_specs=[
            pl.BlockSpec((tile_b, H), lambda i: (i, 0)),   # query tile (pipelined)
            pl.BlockSpec((E, B), lambda i: (0, 0)),        # all titles, transposed (resident)
            pl.BlockSpec((tile_b, E), lambda i: (i, 0)),   # matching titles (pipelined)
            pl.BlockSpec((H, E), lambda i: (0, 0)),        # weight (resident)
            pl.BlockSpec((1, E), lambda i: (0, 0)),        # bias (resident)
        ],
        out_specs=pl.BlockSpec((8, 128), lambda i: (i, 0)),
        compiler_params=cparams,
    )(q_cls, tn_t, tn, w, b)

    return jnp.sum(partials[::8, 0]) / jnp.float32(B)


def _reference_loss(q_cls, t_cls, w, b, margin=0.3, scale=30.0):
    """Pure-JAX reference mirroring the PyTorch forward (f32)."""
    w = w.astype(jnp.float32)
    b = b.astype(jnp.float32).reshape(1, -1)

    def proj_norm(x):
        y = x.astype(jnp.float32) @ w + b
        n = jnp.sqrt(jnp.sum(y * y, axis=-1, keepdims=True))
        return y / jnp.maximum(n, 1e-12)

    qn = proj_norm(q_cls)
    tn = proj_norm(t_cls)
    sim = qn @ tn.T
    B = sim.shape[0]
    sim = (sim - margin * jnp.eye(B, dtype=sim.dtype)) * scale
    labels = jnp.arange(B)
    logz = jax.scipy.special.logsumexp(sim, axis=-1)
    return jnp.mean(logz - sim[jnp.arange(B), labels])


if __name__ == "__main__":
    # Small shapes consistent with the module's forward (output_emb_size=256).
    B = 16       # batch (number of query/title pairs)
    S = 8        # sequence length
    H = 128      # ptm hidden_size
    E = 256      # output_emb_size
    VOCAB = 100
    TILE_B = 8   # f32 query-row tile -> grid of 2 (production: 256 on v6e/v7x)

    key = jax.random.PRNGKey(0)
    k_emb, k_qid, k_tid, k_w, k_b = jax.random.split(key, 5)

    # Deterministic stand-in for the pretrained model: token embedding table.
    # TODO(synk): the real `self.ptm` transformer encoder is not translated.
    emb_table = jax.random.normal(k_emb, (VOCAB, H), dtype=jnp.float32) * 0.1

    query_input_ids = jax.random.randint(k_qid, (B, S), 0, VOCAB)
    title_input_ids = jax.random.randint(k_tid, (B, S), 0, VOCAB)
    # (token_type_ids / attention_mask unused by the embedding stand-in)

    # "last_hidden_state" stand-in + 'cls' pooling (glue in plain JAX).
    q_cls = emb_table[query_input_ids][:, 0, :]          # [B, H]
    t_cls = emb_table[title_input_ids][:, 0, :]          # [B, H]

    # nn.Linear(H, E) parameters (torch weight shape [E, H]) -- pass as [H, E].
    w_torch = jax.random.normal(k_w, (E, H), dtype=jnp.float32) * (1.0 / jnp.sqrt(H))
    b_lin = (jax.random.normal(k_b, (E,), dtype=jnp.float32) * 0.01).reshape(1, E)
    w = w_torch.T                                        # [H, E]

    ref = jax.block_until_ready(_reference_loss(q_cls, t_cls, w, b_lin))

    # f32 path, tiled over query rows (grid of 2) -- strict check.
    loss = semantic_index_batchneg_loss(q_cls, t_cls, w, b_lin,
                                        margin=0.3, scale=30.0, tile_b=TILE_B)
    loss = jax.block_until_ready(loss)
    assert jnp.allclose(loss, ref, rtol=1e-5, atol=1e-4), (loss, ref)

    # bf16-MXU path (production lever on v5e/v6e/v7x) -- loose check.
    loss_bf16 = semantic_index_batchneg_loss(q_cls, t_cls, w, b_lin,
                                             margin=0.3, scale=30.0,
                                             tile_b=B, tile_t=B,
                                             matmul_dtype=jnp.bfloat16)
    loss_bf16 = jax.block_until_ready(loss_bf16)
    assert jnp.isfinite(loss_bf16), loss_bf16
    assert jnp.allclose(loss_bf16, ref, rtol=5e-2, atol=1.5e-1), (loss_bf16, ref)

    print("KERNEL_OK")
</pallas_src>

<mosaic_0001>
module attributes {stable_mosaic.version = 11 : i64} {
  func.func @_project_titles_kernel(%arg0: i32, %arg1: memref<16x128xf32, #tpu.memory_space<vmem>>, %arg2: memref<128x256xf32, #tpu.memory_space<vmem>>, %arg3: memref<1x256xf32, #tpu.memory_space<vmem>>, %arg4: memref<256x16xf32, #tpu.memory_space<vmem>>, %arg5: memref<16x256xf32, #tpu.memory_space<vmem>>) attributes {dimension_semantics = [#tpu.dimension_semantics<parallel>], iteration_bounds = array<i64: 1>, scalar_prefetch = 0 : i64, scratch_operands = 0 : i64, tpu.core_type = #tpu.core_type<tc>, window_params = [{transform_indices = @transform_0, window_bounds = array<i64: 16, 128>}, {pipeline_mode = #tpu.pipeline_mode<synchronous>, transform_indices = @transform_1, window_bounds = array<i64: 128, 256>}, {pipeline_mode = #tpu.pipeline_mode<synchronous>, transform_indices = @transform_2, window_bounds = array<i64: 1, 256>}, {transform_indices = @transform_3, window_bounds = array<i64: 256, 16>}, {transform_indices = @transform_4, window_bounds = array<i64: 16, 256>}]} {
    %c0 = arith.constant 0 : index
    %c0_0 = arith.constant 0 : index
    %0 = vector.load %arg1[%c0, %c0_0] : memref<16x128xf32, #tpu.memory_space<vmem>>, vector<16x128xf32>
    %c0_1 = arith.constant 0 : index
    %c0_2 = arith.constant 0 : index
    %1 = vector.load %arg2[%c0_1, %c0_2] : memref<128x256xf32, #tpu.memory_space<vmem>>, vector<128x256xf32>
    %cst = arith.constant dense<0.000000e+00> : vector<16x256xf32>
    %2 = tpu.matmul %0, %1, %cst {dimension_numbers = #tpu.dot_dimension_numbers<[1], [0], [0], [1], [0, 0, 1, 1], [], []>} : vector<16x128xf32>, vector<128x256xf32>, vector<16x256xf32> -> vector<16x256xf32>
    %c0_3 = arith.constant 0 : index
    %c0_4 = arith.constant 0 : index
    %3 = vector.load %arg3[%c0_3, %c0_4] : memref<1x256xf32, #tpu.memory_space<vmem>>, vector<1x256xf32>
    %4 = vector.broadcast %3 : vector<1x256xf32> to vector<16x256xf32>
    %5 = arith.addf %2, %4 : vector<16x256xf32>
    %6 = arith.mulf %5, %5 : vector<16x256xf32>
    %cst_5 = arith.constant dense<0.000000e+00> : vector<16xf32>
    %7 = vector.multi_reduction <add>, %6, %cst_5 [1] : vector<16x256xf32> to vector<16xf32>
    %8 = vector.shape_cast %7 : vector<16xf32> to vector<16x1xf32>
    %cst_6 = arith.constant 1.000000e-24 : f32
    %9 = vector.broadcast %cst_6 : f32 to vector<16x1xf32>
    %10 = arith.maximumf %8, %9 : vector<16x1xf32>
    %11 = math.rsqrt %10 : vector<16x1xf32>
    %12 = vector.broadcast %11 : vector<16x1xf32> to vector<16x256xf32>
    %13 = arith.mulf %5, %12 : vector<16x256xf32>
    %c0_7 = arith.constant 0 : index
    %c0_8 = arith.constant 0 : index
    %14 = vector.load %arg5[%c0_7, %c0_8] : memref<16x256xf32, #tpu.memory_space<vmem>>, vector<16x256xf32>
    tpu.vector_store %arg5[%c0_7, %c0_8], %13 {strides = array<i32>} : memref<16x256xf32, #tpu.memory_space<vmem>>, vector<16x256xf32>,
    %15 = tpu.transpose %13, [1, 0] : vector<16x256xf32> -> vector<256x16xf32>
    %c0_9 = arith.constant 0 : index
    %c0_10 = arith.constant 0 : index
    %16 = vector.load %arg4[%c0_9, %c0_10] : memref<256x16xf32, #tpu.memory_space<vmem>>, vector<256x16xf32>
    tpu.vector_store %arg4[%c0_9, %c0_10], %15 {strides = array<i32>} : memref<256x16xf32, #tpu.memory_space<vmem>>, vector<256x16xf32>,
    return
  }
  func.func @transform_0(%arg0: i32) -> (i32, i32) {
    %c0_i32 = arith.constant 0 : i32
    %c0_i32_0 = arith.constant 0 : i32
    return %arg0, %c0_i32 : i32, i32
  }
  func.func @transform_1(%arg0: i32) -> (i32, i32) {
    %c0_i32 = arith.constant 0 : i32
    %c0_i32_0 = arith.constant 0 : i32
    %c0_i32_1 = arith.constant 0 : i32
    return %c0_i32, %c0_i32_0 : i32, i32
  }
  func.func @transform_2(%arg0: i32) -> (i32, i32) {
    %c0_i32 = arith.constant 0 : i32
    %c0_i32_0 = arith.constant 0 : i32
    %c0_i32_1 = arith.constant 0 : i32
    return %c0_i32, %c0_i32_0 : i32, i32
  }
  func.func @transform_3(%arg0: i32) -> (i32, i32) {
    %c0_i32 = arith.constant 0 : i32
    %c0_i32_0 = arith.constant 0 : i32
    return %c0_i32, %arg0 : i32, i32
  }
  func.func @transform_4(%arg0: i32) -> (i32, i32) {
    %c0_i32 = arith.constant 0 : i32
    %c0_i32_0 = arith.constant 0 : i32
    return %arg0, %c0_i32 : i32, i32
  }
}

</mosaic_0001>

<llo_original>
// kernel: tpu_custom_call.1
$region0: #{tpu_custom_call.1}
  #allocation0 [shape = 'u32[]', space=smem, size = 0x4, offset = 0x4, fixed_abs, tag = 'smem constant byte address 0x4 - core index']
  #allocation1 [shape = 'u32[144,128]{1,0:T(1,128)}', space=vmem, size = 0x12000, scoped, tag = 'internal scratch']
  %s0 = inlined_call_operand.hbm [shape: f32[16,128], index: 0, kind: input, shape index: {}]
  %s1 = inlined_call_operand.hbm [shape: f32[128,256], index: 1, kind: input, shape index: {}]
  %s2 = inlined_call_operand.vmem [shape: f32[1,256], index: 2, kind: input, shape index: {}]
  %s3 = inlined_call_operand.vmem [shape: f32[256,16], index: 3, kind: output, shape index: {0}]
  %s4 = inlined_call_operand.hbm [shape: f32[16,256], index: 4, kind: output, shape index: {1}]
  %5 = xla_tuple %s3, %s4
  %s6 = sld [smem:[#allocation0]]
  $region38: #{tpu_custom_call.1} parent=0
    _
  %s8 = ssub.s32 1, %s6
  %s9 = scalar_select 0, %s8, %s6
  $region1: #{tpu_custom_call.1} parent=0
    #allocation2 [shape = 'u8[8192]{0}', space=vmem, size = 0x2000, scoped, tag = 'input window, operand 0, single buffered']
    #allocation3 [shape = 's32[1]{0}', space=sflag, size = 0x4, scoped, tag = 'scoped memory for tpu_custom_call.1']
    #allocation4 [shape = 's32[1]{0}', space=sflag, size = 0x4, scoped, tag = 'scoped memory for tpu_custom_call.1']
    #allocation5 [shape = 'u8[131072]{0}', space=vmem, size = 0x20000, scoped, tag = 'input window, operand 1, single buffered']
    #allocation6 [shape = 's32[1]{0}', space=sflag, size = 0x4, scoped, tag = 'scoped memory for tpu_custom_call.1']
    #allocation7 [shape = 'u8[16384]{0}', space=vmem, size = 0x4000, scoped, tag = 'output window, operand 1, single buffered']
    %10 = vsyncpa [#allocation3], 0
    %11 = vsyncpa [#allocation6], 0
    %12 = vsyncpa [#allocation4], 0
    // Predicated region
    $region2: #{tpu_custom_call.1} parent=1 // pred_check
      _
    $region3: #{tpu_custom_call.1} parent=1 // pred_check_branch
      %14 = sbr.rel (0) target = $region5
    $region4: #{tpu_custom_call.1} parent=1 // pred_region
      %s16 = ssub.s32 256, 256
      %17 = vsyncadd [#allocation3], %s16
      %s18 = sshll.u32 [#allocation2], 4
      %s19 = int_to_ptr.vmem [resolvable:$true] %s18
      %24 = dma.hbm_to_vmem [thread:$0]  %s0, 256, %s19, [#allocation3], 128, 128, 8
    $region5: #{tpu_custom_call.1} parent=1 // pred_fallthru
      _
    // Predicated region
    $region6: #{tpu_custom_call.1} parent=1 // pred_check
      _
    $region7: #{tpu_custom_call.1} parent=1 // pred_check_branch
      %26 = sbr.rel (0) target = $region9
    $region8: #{tpu_custom_call.1} parent=1 // pred_region
      %s28 = ssub.s32 4096, 4096
      %29 = vsyncadd [#allocation6], %s28
      %s30 = sshll.u32 [#allocation5], 4
      %s31 = int_to_ptr.vmem [resolvable:$true] %s30
      %36 = dma.hbm_to_vmem [thread:$0]  %s1, 4096, %s31, [#allocation6], 256, 256, 16
    $region9: #{tpu_custom_call.1} parent=1 // pred_fallthru
      _
    // Predicated region
    $region10: #{tpu_custom_call.1} parent=1 // pred_check
      _
    $region11: #{tpu_custom_call.1} parent=1 // pred_check_branch
      %38 = sbr.rel (0) target = $region13
    $region12: #{tpu_custom_call.1} parent=1 // pred_region
      _
    $region13: #{tpu_custom_call.1} parent=1 // pred_fallthru
      _
    // Predicated region
    $region14: #{tpu_custom_call.1} parent=1 // pred_check
      _
    $region15: #{tpu_custom_call.1} parent=1 // pred_check_branch
      %40 = sbr.rel (0) target = $region17
    $region16: #{tpu_custom_call.1} parent=1 // pred_region
      %41 = dma.done [#allocation3], 256
    $region17: #{tpu_custom_call.1} parent=1 // pred_fallthru
      _
    // Predicated region
    $region18: #{tpu_custom_call.1} parent=1 // pred_check
      _
    $region19: #{tpu_custom_call.1} parent=1 // pred_check_branch
      %43 = sbr.rel (0) target = $region21
    $region20: #{tpu_custom_call.1} parent=1 // pred_region
      %44 = dma.done [#allocation6], 4096
    $region21: #{tpu_custom_call.1} parent=1 // pred_fallthru
      _
    %v45 = vld [vmem:[#allocation2] sm:$0xff]
    %v46 = vld [vmem:[#allocation2 + $0x8] sm:$0xff]
    %v47 = vld [vmem:[#allocation5] sm:$0xff]
    %v48 = vld [vmem:[#allocation5 + $0x8] sm:$0xff]
    %v49 = vld [vmem:[#allocation5 + $0x10] sm:$0xff]
    %v50 = vld [vmem:[#allocation5 + $0x18] sm:$0xff]
    %v51 = vld [vmem:[#allocation5 + $0x20] sm:$0xff]
    %v52 = vld [vmem:[#allocation5 + $0x28] sm:$0xff]
    %v53 = vld [vmem:[#allocation5 + $0x30] sm:$0xff]
    %v54 = vld [vmem:[#allocation5 + $0x38] sm:$0xff]
    %v55 = vld [vmem:[#allocation5 + $0x40] sm:$0xff]
    %v56 = vld [vmem:[#allocation5 + $0x48] sm:$0xff]
    %v57 = vld [vmem:[#allocation5 + $0x50] sm:$0xff]
    %v58 = vld [vmem:[#allocation5 + $0x58] sm:$0xff]
    %v59 = vld [vmem:[#allocation5 + $0x60] sm:$0xff]
    %v60 = vld [vmem:[#allocation5 + $0x68] sm:$0xff]
    %v61 = vld [vmem:[#allocation5 + $0x70] sm:$0xff]
    %v62 = vld [vmem:[#allocation5 + $0x78] sm:$0xff]
    %v63 = vld [vmem:[#allocation5 + $0x80] sm:$0xff]
    %v64 = vld [vmem:[#allocation5 + $0x88] sm:$0xff]
    %v65 = vld [vmem:[#allocation5 + $0x90] sm:$0xff]
    %v66 = vld [vmem:[#allocation5 + $0x98] sm:$0xff]
    %v67 = vld [vmem:[#allocation5 + $0xa0] sm:$0xff]
    %v68 = vld [vmem:[#allocation5 + $0xa8] sm:$0xff]
    %v69 = vld [vmem:[#allocation5 + $0xb0] sm:$0xff]
    %v70 = vld [vmem:[#allocation5 + $0xb8] sm:$0xff]
    %v71 = vld [vmem:[#allocation5 + $0xc0] sm:$0xff]
    %v72 = vld [vmem:[#allocation5 + $0xc8] sm:$0xff]
    %v73 = vld [vmem:[#allocation5 + $0xd0] sm:$0xff]
    %v74 = vld [vmem:[#allocation5 + $0xd8] sm:$0xff]
    %v75 = vld [vmem:[#allocation5 + $0xe0] sm:$0xff]
    %v76 = vld [vmem:[#allocation5 + $0xe8] sm:$0xff]
    %v77 = vld [vmem:[#allocation5 + $0xf0] sm:$0xff]
    %v78 = vld [vmem:[#allocation5 + $0xf8] sm:$0xff]
    %v79 = vld [vmem:[%s2] sm:$0x3]
    %v81 = vlaneseq
    %v82 = vshrl.u32 %v81, 7
    %v83 = vsub.s32 0, %v82
    %v84 = vrot.slane %v79, %v83
    %v85 = vlaneseq
    %v86 = vshrl.u32 %v85, 7
    %v87 = vsub.s32 1, %v86
    %v88 = vrot.slane %v79, %v87
    %91 = vmatprep.subr.mxu0 %v78
    %92 = vmatpush1.msra.mxu0 %v77
    %93 = vmatprep.subr.mxu0 %v76
    %94 = vmatpush1.msra.mxu0 %v75
    %95 = vmatprep.subr.mxu0 %v74
    %96 = vmatpush1.msra.mxu0 %v73
    %97 = vmatprep.subr.mxu0 %v72
    %98 = vmatpush1.msra.mxu0 %v71
    %99 = vmatprep.subr.mxu0 %v70
    %100 = vmatpush1.msra.mxu0 %v69
    %101 = vmatprep.subr.mxu0 %v68
    %102 = vmatpush1.msra.mxu0 %v67
    %103 = vmatprep.subr.mxu0 %v66
    %104 = vmatpush1.msra.mxu0 %v65
    %105 = vmatprep.subr.mxu0 %v64
    %106 = vmatpush1.msra.mxu0 %v63
    %107 = vmatprep.subr.mxu0 %v62
    %108 = vmatpush1.msra.mxu0 %v61
    %109 = vmatprep.subr.mxu0 %v60
    %110 = vmatpush1.msra.mxu0 %v59
    %111 = vmatprep.subr.mxu0 %v58
    %112 = vmatpush1.msra.mxu0 %v57
    %113 = vmatprep.subr.mxu0 %v56
    %114 = vmatpush1.msra.mxu0 %v55
    %115 = vmatprep.subr.mxu0 %v54
    %116 = vmatpush1.msra.mxu0 %v53
    %117 = vmatprep.subr.mxu0 %v52
    %118 = vmatpush1.msra.mxu0 %v51
    %119 = vmatprep.subr.mxu0 %v50
    %120 = vmatpush1.msra.mxu0 %v49
    %121 = vmatprep.subr.mxu0 %v48
    %122 = vmatpush1.msra.mxu0 %v47
    %123 = vmatprep.subr.mxu0 0.0
    %124 = vmatpush2.msra.mxu0 0.0
    %125 = vmatprep.subr.mxu0 0.0
    %126 = vmatpush2.msra.mxu0 0.0
    %127 = vmatprep.subr.mxu0 0.0
    %128 = vmatpush2.msra.mxu0 0.0
    %129 = vmatprep.subr.mxu0 0.0
    %130 = vmatpush2.msra.mxu0 0.0
    %131 = vmatprep.subr.mxu0 0.0
    %132 = vmatpush2.msra.mxu0 0.0
    %133 = vmatprep.subr.mxu0 0.0
    %134 = vmatpush2.msra.mxu0 0.0
    %135 = vmatprep.subr.mxu0 0.0
    %136 = vmatpush2.msra.mxu0 0.0
    %137 = vmatprep.subr.mxu0 0.0
    %138 = vmatpush2.msra.mxu0 0.0
    %139 = vmatprep.subr.mxu0 0.0
    %140 = vmatpush2.msra.mxu0 0.0
    %141 = vmatprep.subr.mxu0 0.0
    %142 = vmatpush2.msra.mxu0 0.0
    %143 = vmatprep.subr.mxu0 0.0
    %144 = vmatpush2.msra.mxu0 0.0
    %145 = vmatprep.subr.mxu0 0.0
    %146 = vmatpush2.msra.mxu0 0.0
    %147 = vmatprep.subr.mxu0 0.0
    %148 = vmatpush2.msra.mxu0 0.0
    %149 = vmatprep.subr.mxu0 0.0
    %150 = vmatpush2.msra.mxu0 0.0
    %151 = vmatprep.subr.mxu0 0.0
    %152 = vmatpush2.msra.mxu0 0.0
    %153 = vmatprep.subr.mxu0 0.0
    %154 = vmatpush2.msra.mxu0 0.0
    %155 = vmatprep.mubr.f32.mxu0 0.0
    %156 = vmatmul.mubr.f32.gmra.mxu0 %v45
    %v157 = vpop.f32.mrf.mxu0
    %v158 = vadd.f32 %v84, %v157
    %v159 = vpop.f32.mrf.mxu0
    %v160 = vadd.f32 %v88, %v159
    %161 = vmatprep.mubr.f32.mxu0 0.0
    %162 = vmatmul.mubr.f32.gmra.mxu0 %v46
    %v163 = vpop.f32.mrf.mxu0
    %v164 = vadd.f32 %v84, %v163
    %v165 = vpop.f32.mrf.mxu0
    %v166 = vadd.f32 %v88, %v165
    %167 = vdwg.mxu0
    %v168 = vmul.f32 %v158, %v158
    %v169 = vmul.f32 %v160, %v160
    %v170 = vmul.f32 %v164, %v164
    %v171 = vmul.f32 %v166, %v166
    %v172 = vadd.f32 %v168, %v169
    %173 = vadd.xlane.f32.xlu0 %v172
    %v174 = vpop.xlane.xlu0 %173
    %v175 = vadd.f32 %v170, %v171
    %176 = vadd.xlane.f32.xlu0 %v175
    %v177 = vpop.xlane.xlu0 %176
    %v178 = vmax.f32 %v174, 1e-24
    %v179 = vmax.f32 %v177, 1e-24
    %v180 = vrsqrt.pop %v178
    %v181 = vrsqrt.pop %v179
    %v182 = vmul.f32 %v158, %v180
    %v183 = vmul.f32 %v160, %v180
    %v184 = vmul.f32 %v164, %v181
    %v185 = vmul.f32 %v166, %v181
    %186 = vst [vmem:[#allocation7] sm:$0xff] %v182
    %187 = vst [vmem:[#allocation7 + $0x8] sm:$0xff] %v183
    %188 = vst [vmem:[#allocation7 + $0x10] sm:$0xff] %v184
    %189 = vst [vmem:[#allocation7 + $0x18] sm:$0xff] %v185
    %190 = vxpose.xlu0.b32.start [1/16] %v182, 128
    %191 = vxpose.xlu0.b32.cont [2/16] %v184, 128
    %192 = vxpose.xlu0.b32.cont [3/16] 0.0, 128
    %193 = vxpose.xlu0.b32.cont [4/16] 0.0, 128
    %194 = vxpose.xlu0.b32.cont [5/16] 0.0, 128
    %195 = vxpose.xlu0.b32.cont [6/16] 0.0, 128
    %196 = vxpose.xlu0.b32.cont [7/16] 0.0, 128
    %197 = vxpose.xlu0.b32.cont [8/16] 0.0, 128
    %198 = vxpose.xlu0.b32.cont [9/16] 0.0, 128
    %199 = vxpose.xlu0.b32.cont [10/16] 0.0, 128
    %200 = vxpose.xlu0.b32.cont [11/16] 0.0, 128
    %201 = vxpose.xlu0.b32.cont [12/16] 0.0, 128
    %202 = vxpose.xlu0.b32.cont [13/16] 0.0, 128
    %203 = vxpose.xlu0.b32.cont [14/16] 0.0, 128
    %204 = vxpose.xlu0.b32.cont [15/16] 0.0, 128
    %205 = vxpose.xlu0.b32.end [16/16] 0.0, 128
    %v206 = vpop.trf.xlu0
    %v207 = vpop.trf.xlu0
    %v208 = vpop.trf.xlu0
    %v209 = vpop.trf.xlu0
    %v210 = vpop.trf.xlu0
    %v211 = vpop.trf.xlu0
    %v212 = vpop.trf.xlu0
    %v213 = vpop.trf.xlu0
    %v214 = vpop.trf.xlu0
    %v215 = vpop.trf.xlu0
    %v216 = vpop.trf.xlu0
    %v217 = vpop.trf.xlu0
    %v218 = vpop.trf.xlu0
    %v219 = vpop.trf.xlu0
    %v220 = vpop.trf.xlu0
    %v221 = vpop.trf.xlu0
    %222 = vxpose.xlu0.b32.start [1/16] %v183, 128
    %223 = vxpose.xlu0.b32.cont [2/16] %v185, 128
    %224 = vxpose.xlu0.b32.cont [3/16] 0.0, 128
    %225 = vxpose.xlu0.b32.cont [4/16] 0.0, 128
    %226 = vxpose.xlu0.b32.cont [5/16] 0.0, 128
    %227 = vxpose.xlu0.b32.cont [6/16] 0.0, 128
    %228 = vxpose.xlu0.b32.cont [7/16] 0.0, 128
    %229 = vxpose.xlu0.b32.cont [8/16] 0.0, 128
    %230 = vxpose.xlu0.b32.cont [9/16] 0.0, 128
    %231 = vxpose.xlu0.b32.cont [10/16] 0.0, 128
    %232 = vxpose.xlu0.b32.cont [11/16] 0.0, 128
    %233 = vxpose.xlu0.b32.cont [12/16] 0.0, 128
    %234 = vxpose.xlu0.b32.cont [13/16] 0.0, 128
    %235 = vxpose.xlu0.b32.cont [14/16] 0.0, 128
    %236 = vxpose.xlu0.b32.cont [15/16] 0.0, 128
    %237 = vxpose.xlu0.b32.end [16/16] 0.0, 128
    %v238 = vpop.trf.xlu0
    %v239 = vpop.trf.xlu0
    %v240 = vpop.trf.xlu0
    %v241 = vpop.trf.xlu0
    %v242 = vpop.trf.xlu0
    %v243 = vpop.trf.xlu0
    %v244 = vpop.trf.xlu0
    %v245 = vpop.trf.xlu0
    %v246 = vpop.trf.xlu0
    %v247 = vpop.trf.xlu0
    %v248 = vpop.trf.xlu0
    %v249 = vpop.trf.xlu0
    %v250 = vpop.trf.xlu0
    %v251 = vpop.trf.xlu0
    %v252 = vpop.trf.xlu0
    %v253 = vpop.trf.xlu0
    %vm254 = vcmask 130048
    %255 = vst.msk [vmem:[%s3] sm:$0xff] %vm254, %v206
    %256 = vst.msk [vmem:[%s3 + $0x8] sm:$0xff] %vm254, %v207
    %257 = vst.msk [vmem:[%s3 + $0x10] sm:$0xff] %vm254, %v208
    %258 = vst.msk [vmem:[%s3 + $0x18] sm:$0xff] %vm254, %v209
    %259 = vst.msk [vmem:[%s3 + $0x20] sm:$0xff] %vm254, %v210
    %260 = vst.msk [vmem:[%s3 + $0x28] sm:$0xff] %vm254, %v211
    %261 = vst.msk [vmem:[%s3 + $0x30] sm:$0xff] %vm254, %v212
    %262 = vst.msk [vmem:[%s3 + $0x38] sm:$0xff] %vm254, %v213
    %263 = vst.msk [vmem:[%s3 + $0x40] sm:$0xff] %vm254, %v214
    %264 = vst.msk [vmem:[%s3 + $0x48] sm:$0xff] %vm254, %v215
    %265 = vst.msk [vmem:[%s3 + $0x50] sm:$0xff] %vm254, %v216
    %266 = vst.msk [vmem:[%s3 + $0x58] sm:$0xff] %vm254, %v217
    %267 = vst.msk [vmem:[%s3 + $0x60] sm:$0xff] %vm254, %v218
    %268 = vst.msk [vmem:[%s3 + $0x68] sm:$0xff] %vm254, %v219
    %269 = vst.msk [vmem:[%s3 + $0x70] sm:$0xff] %vm254, %v220
    %270 = vst.msk [vmem:[%s3 + $0x78] sm:$0xff] %vm254, %v221
    %271 = vst.msk [vmem:[%s3 + $0x80] sm:$0xff] %vm254, %v238
    %272 = vst.msk [vmem:[%s3 + $0x88] sm:$0xff] %vm254, %v239
    %273 = vst.msk [vmem:[%s3 + $0x90] sm:$0xff] %vm254, %v240
    %274 = vst.msk [vmem:[%s3 + $0x98] sm:$0xff] %vm254, %v241
    %275 = vst.msk [vmem:[%s3 + $0xa0] sm:$0xff] %vm254, %v242
    %276 = vst.msk [vmem:[%s3 + $0xa8] sm:$0xff] %vm254, %v243
    %277 = vst.msk [vmem:[%s3 + $0xb0] sm:$0xff] %vm254, %v244
    %278 = vst.msk [vmem:[%s3 + $0xb8] sm:$0xff] %vm254, %v245
    %279 = vst.msk [vmem:[%s3 + $0xc0] sm:$0xff] %vm254, %v246
    %280 = vst.msk [vmem:[%s3 + $0xc8] sm:$0xff] %vm254, %v247
    %281 = vst.msk [vmem:[%s3 + $0xd0] sm:$0xff] %vm254, %v248
    %282 = vst.msk [vmem:[%s3 + $0xd8] sm:$0xff] %vm254, %v249
    %283 = vst.msk [vmem:[%s3 + $0xe0] sm:$0xff] %vm254, %v250
    %284 = vst.msk [vmem:[%s3 + $0xe8] sm:$0xff] %vm254, %v251
    %285 = vst.msk [vmem:[%s3 + $0xf0] sm:$0xff] %vm254, %v252
    %286 = vst.msk [vmem:[%s3 + $0xf8] sm:$0xff] %vm254, %v253
    // Predicated region
    $region22: #{tpu_custom_call.1} parent=1 // pred_check
      _
    $region23: #{tpu_custom_call.1} parent=1 // pred_check_branch
      %288 = sbr.rel (0) target = $region25
    $region24: #{tpu_custom_call.1} parent=1 // pred_region
      _
    $region25: #{tpu_custom_call.1} parent=1 // pred_fallthru
      _
    // Predicated region
    $region26: #{tpu_custom_call.1} parent=1 // pred_check
      _
    $region27: #{tpu_custom_call.1} parent=1 // pred_check_branch
      %290 = sbr.rel (0) target = $region29
    $region28: #{tpu_custom_call.1} parent=1 // pred_region
      %s292 = ssub.s32 512, 512
      %293 = vsyncadd [#allocation4], %s292
      %s294 = sshll.u32 [#allocation7], 4
      %s295 = int_to_ptr.vmem [resolvable:$true] %s294
      %300 = dma.vmem_to_hbm [thread:$0]  %s295, 512, %s4, [#allocation4], 256, 256, 16
    $region29: #{tpu_custom_call.1} parent=1 // pred_fallthru
      _
    // Predicated region
    $region30: #{tpu_custom_call.1} parent=1 // pred_check
      _
    $region31: #{tpu_custom_call.1} parent=1 // pred_check_branch
      %302 = sbr.rel (0) target = $region33
    $region32: #{tpu_custom_call.1} parent=1 // pred_region
      _
    $region33: #{tpu_custom_call.1} parent=1 // pred_fallthru
      _
    // Predicated region
    $region34: #{tpu_custom_call.1} parent=1 // pred_check
      _
    $region35: #{tpu_custom_call.1} parent=1 // pred_check_branch
      %304 = sbr.rel (0) target = $region37
    $region36: #{tpu_custom_call.1} parent=1 // pred_region
      %305 = dma.done [#allocation4], 512
    $region37: #{tpu_custom_call.1} parent=1 // pred_fallthru
      _
    %306 = vsyncpa [#allocation3], 1
    %307 = vsyncpa [#allocation6], 1
    %308 = vsyncpa [#allocation4], 1

</llo_original>
